<compile_context>
chip_gen: v5e
topology: v5e:2x2
jax: 0.10.0
libtpu: 0.0.40
codegen_flags: <defaults>
</compile_context>

<pallas_src>
import jax
import jax.numpy as jnp
from jax.experimental import pallas as pl
from jax.experimental.pallas import tpu as pltpu


# ------------------------------ Pallas kernel --------------------------------

def _mlp_fused_kernel(x_ref, w1_ref, b1_ref, w2_ref, b2_ref, o_ref):
    # Cast the activation tile to bf16 at the MXU (no wrapper-side cast pass).
    xb = x_ref[...].astype(jnp.bfloat16)
    # Linear1 (bf16 x bf16 -> f32 accumulate on the MXU)
    h = jnp.dot(xb, w1_ref[...], preferred_element_type=jnp.float32)
    h = h + b1_ref[...]
    # Exact (erf) GELU -- matches torch.nn.GELU() default.
    h = 0.5 * h * (1.0 + jax.lax.erf(h * 0.7071067811865476))
    # Linear2 (hidden back to bf16 for the MXU, f32 accumulation)
    y = jnp.dot(h.astype(w2_ref.dtype), w2_ref[...],
                preferred_element_type=jnp.float32)
    # Write directly in the caller's dtype -> no post-kernel convert/slice pass.
    o_ref[...] = (y + b2_ref[...]).astype(o_ref.dtype)


# ------------------------------ tiling helpers --------------------------------

def _round_up(x, m):
    return (x + m - 1) // m * m


_TM_CAP = 1024            # rows per grid step (big tiles track the HBM roofline)
_VMEM_BUDGET = 48 << 20   # stay well inside v7x's 64 MiB physical VMEM


def _fused_vmem_bytes(tm, oup, h_pad, x_bytes, out_bytes):
    """Rough per-step VMEM footprint (double-buffered I/O + f32 intermediate)."""
    return (2 * tm * oup * x_bytes                 # x tiles (double-buffered)
            + 2 * tm * oup * out_bytes             # out tiles
            + 2 * 2 * (oup * h_pad + h_pad * oup)  # bf16 W1 / W2 (double-buffered)
            + 2 * 4 * (h_pad + oup)                # f32 biases
            + 2 * tm * h_pad * 4)                  # f32 hidden intermediate (+copy)


def _choose_m_tile(m, oup, h_pad, x_bytes, out_bytes):
    """Pick the row-tile.

    * Single full-extent block when M fits (fewer grid steps on v5e/v6e).
    * Otherwise an EVEN number of steps so both v7x TensorCores are loaded,
      shrinking the tile if the fused working set would exceed the VMEM budget.
    """
    if (m <= _TM_CAP
            and _fused_vmem_bytes(m, oup, h_pad, x_bytes, out_bytes) <= _VMEM_BUDGET):
        return m                                  # full-dim block: always legal
    steps = pl.cdiv(m, _TM_CAP)
    if steps % 2:
        steps += 1                                # even -> balanced across 2 v7x TCs
    tm = _round_up(pl.cdiv(m, steps), 128)
    while tm > 128 and _fused_vmem_bytes(tm, oup, h_pad, x_bytes, out_bytes) > _VMEM_BUDGET:
        tm = _round_up(max(tm // 2, 128), 128)
    return tm


# ------------------------------ wrapper / glue --------------------------------

def prepack_mlp_params(w1, b1, w2, b2):
    """One-time weight prep.  Torch layout in: w1 (mlp_dim, oup), w2 (oup, mlp_dim).

    Returns transposed weights with the hidden dim padded to a multiple of 128
    (lane-dense intermediate), cast to bf16; f32 biases.  Padding is inert:
    padded hidden columns get bias 0 -> GELU(0)=0 and multiply zero W2 rows.
    The K (=oup) and N (=oup) dims are kept at their TRUE sizes (no zero work).
    """
    mlp_dim, oup = w1.shape
    h_pad = _round_up(mlp_dim, 128)
    w1p = jnp.zeros((oup, h_pad), jnp.bfloat16).at[:, :mlp_dim].set(
        jnp.asarray(w1).T.astype(jnp.bfloat16))
    b1p = jnp.zeros((1, h_pad), jnp.float32).at[0, :mlp_dim].set(
        jnp.asarray(b1).astype(jnp.float32))
    w2p = jnp.zeros((h_pad, oup), jnp.bfloat16).at[:mlp_dim, :].set(
        jnp.asarray(w2).T.astype(jnp.bfloat16))
    b2p = jnp.asarray(b2).astype(jnp.float32).reshape(1, oup)
    return dict(w1=w1p, b1=b1p, w2=w2p, b2=b2p)


def mlp_forward(x, params):
    """x: (..., oup) -> (..., oup).  Dropout(p=0) layers are identities."""
    orig_shape = x.shape
    oup = orig_shape[-1]
    x2 = x.reshape(-1, oup)                        # metadata-only reshape
    M = x2.shape[0]

    w1, b1, w2, b2 = params["w1"], params["b1"], params["w2"], params["b2"]
    h_pad = w1.shape[1]
    out_dtype = x.dtype
    x_bytes = x2.dtype.itemsize
    out_bytes = jnp.dtype(out_dtype).itemsize

    tm = _choose_m_tile(M, oup, h_pad, x_bytes, out_bytes)
    grid_m = pl.cdiv(M, tm)

    vmem_limit = int(min(
        max(_fused_vmem_bytes(tm, oup, h_pad, x_bytes, out_bytes) + (4 << 20),
            32 << 20),
        64 << 20))

    cost = pl.CostEstimate(
        flops=2 * M * (oup * h_pad + h_pad * oup),
        transcendentals=M * h_pad,
        bytes_accessed=(M * oup * (x_bytes + out_bytes)
                        + w1.size * w1.dtype.itemsize
                        + w2.size * w2.dtype.itemsize
                        + b1.size * b1.dtype.itemsize
                        + b2.size * b2.dtype.itemsize))

    out = pl.pallas_call(
        _mlp_fused_kernel,
        out_shape=jax.ShapeDtypeStruct((M, oup), out_dtype),
        grid=(grid_m,),
        in_specs=[
            pl.BlockSpec((tm, oup), lambda i: (i, 0)),      # x tile (true K, no pad)
            pl.BlockSpec((oup, h_pad), lambda i: (0, 0)),   # W1 (resident)
            pl.BlockSpec((1, h_pad), lambda i: (0, 0)),     # b1
            pl.BlockSpec((h_pad, oup), lambda i: (0, 0)),   # W2 (resident)
            pl.BlockSpec((1, oup), lambda i: (0, 0)),       # b2
        ],
        out_specs=pl.BlockSpec((tm, oup), lambda i: (i, 0)),
        compiler_params=pltpu.CompilerParams(
            dimension_semantics=("parallel",),
            vmem_limit_bytes=vmem_limit),
        cost_estimate=cost,
    )(x2, w1, b1, w2, b2)

    return out.reshape(orig_shape)


mlp_forward_jit = jax.jit(mlp_forward)


# Pure-JAX reference (f32, torch layout) for a correctness sanity check.
def mlp_reference(x, w1, b1, w2, b2):
    h = x @ w1.T + b1
    h = 0.5 * h * (1.0 + jax.lax.erf(h * 0.7071067811865476))
    return h @ w2.T + b2


# ----------------------------------- main -------------------------------------

if __name__ == "__main__":
    # Shapes implied by the module: x (..., oup); Linear(oup -> mlp_dim -> oup).
    batch, seq, oup, mlp_dim = 2, 64, 32, 128

    key = jax.random.PRNGKey(0)
    kx, k1, k2, k3, k4 = jax.random.split(key, 5)

    x = jax.random.normal(kx, (batch, seq, oup), dtype=jnp.float32)
    # Torch-layout parameters: weight (out_features, in_features), bias (out,).
    w1 = 0.1 * jax.random.normal(k1, (mlp_dim, oup), dtype=jnp.float32)
    b1 = 0.01 * jax.random.normal(k2, (mlp_dim,), dtype=jnp.float32)
    w2 = 0.1 * jax.random.normal(k3, (oup, mlp_dim), dtype=jnp.float32)
    b2 = 0.01 * jax.random.normal(k4, (oup,), dtype=jnp.float32)

    packed = prepack_mlp_params(w1, b1, w2, b2)   # one-time weight prep

    out = mlp_forward_jit(x, packed)
    out = jax.block_until_ready(out)

    # Sanity check vs f32 reference (loose tolerance for bf16 MXU operands).
    ref = mlp_reference(x, w1, b1, w2, b2)
    max_err = float(jnp.max(jnp.abs(out - ref)))
    assert out.shape == x.shape
    assert out.dtype == x.dtype
    assert max_err < 5e-2, f"max abs error too large: {max_err}"

    print("KERNEL_OK")
</pallas_src>

<mosaic_0001>
module attributes {stable_mosaic.version = 11 : i64} {
  func.func @_mlp_fused_kernel(%arg0: i32, %arg1: memref<128x32xf32, #tpu.memory_space<vmem>>, %arg2: memref<32x128xbf16, #tpu.memory_space<vmem>>, %arg3: memref<1x128xf32, #tpu.memory_space<vmem>>, %arg4: memref<128x32xbf16, #tpu.memory_space<vmem>>, %arg5: memref<1x32xf32, #tpu.memory_space<vmem>>, %arg6: memref<128x32xf32, #tpu.memory_space<vmem>>) attributes {dimension_semantics = [#tpu.dimension_semantics<parallel>], iteration_bounds = array<i64: 1>, scalar_prefetch = 0 : i64, scratch_operands = 0 : i64, tpu.core_type = #tpu.core_type<tc>, window_params = [{transform_indices = @transform_0, window_bounds = array<i64: 128, 32>}, {pipeline_mode = #tpu.pipeline_mode<synchronous>, transform_indices = @transform_1, window_bounds = array<i64: 32, 128>}, {pipeline_mode = #tpu.pipeline_mode<synchronous>, transform_indices = @transform_2, window_bounds = array<i64: 1, 128>}, {pipeline_mode = #tpu.pipeline_mode<synchronous>, transform_indices = @transform_3, window_bounds = array<i64: 128, 32>}, {pipeline_mode = #tpu.pipeline_mode<synchronous>, transform_indices = @transform_4, window_bounds = array<i64: 1, 32>}, {transform_indices = @transform_5, window_bounds = array<i64: 128, 32>}]} {
    %c0 = arith.constant 0 : index
    %c0_0 = arith.constant 0 : index
    %0 = vector.load %arg1[%c0, %c0_0] : memref<128x32xf32, #tpu.memory_space<vmem>>, vector<128x32xf32>
    %1 = arith.truncf %0 : vector<128x32xf32> to vector<128x32xbf16>
    %c0_1 = arith.constant 0 : index
    %c0_2 = arith.constant 0 : index
    %2 = vector.load %arg2[%c0_1, %c0_2] : memref<32x128xbf16, #tpu.memory_space<vmem>>, vector<32x128xbf16>
    %cst = arith.constant dense<0.000000e+00> : vector<128x128xf32>
    %3 = tpu.matmul %1, %2, %cst {dimension_numbers = #tpu.dot_dimension_numbers<[1], [0], [0], [1], [0, 0, 1, 1], [], []>} : vector<128x32xbf16>, vector<32x128xbf16>, vector<128x128xf32> -> vector<128x128xf32>
    %c0_3 = arith.constant 0 : index
    %c0_4 = arith.constant 0 : index
    %4 = vector.load %arg3[%c0_3, %c0_4] : memref<1x128xf32, #tpu.memory_space<vmem>>, vector<1x128xf32>
    %5 = vector.broadcast %4 : vector<1x128xf32> to vector<128x128xf32>
    %6 = arith.addf %3, %5 : vector<128x128xf32>
    %cst_5 = arith.constant 5.000000e-01 : f32
    %7 = vector.broadcast %cst_5 : f32 to vector<128x128xf32>
    %8 = arith.mulf %7, %6 : vector<128x128xf32>
    %cst_6 = arith.constant 0.707106769 : f32
    %9 = vector.broadcast %cst_6 : f32 to vector<128x128xf32>
    %10 = arith.mulf %6, %9 : vector<128x128xf32>
    %11 = math.erf %10 : vector<128x128xf32>
    %cst_7 = arith.constant 1.000000e+00 : f32
    %12 = vector.broadcast %cst_7 : f32 to vector<128x128xf32>
    %13 = arith.addf %12, %11 : vector<128x128xf32>
    %14 = arith.mulf %8, %13 : vector<128x128xf32>
    %15 = arith.truncf %14 : vector<128x128xf32> to vector<128x128xbf16>
    %c0_8 = arith.constant 0 : index
    %c0_9 = arith.constant 0 : index
    %16 = vector.load %arg4[%c0_8, %c0_9] : memref<128x32xbf16, #tpu.memory_space<vmem>>, vector<128x32xbf16>
    %cst_10 = arith.constant dense<0.000000e+00> : vector<128x32xf32>
    %17 = tpu.matmul %15, %16, %cst_10 {dimension_numbers = #tpu.dot_dimension_numbers<[1], [0], [0], [1], [0, 0, 1, 1], [], []>} : vector<128x128xbf16>, vector<128x32xbf16>, vector<128x32xf32> -> vector<128x32xf32>
    %c0_11 = arith.constant 0 : index
    %c0_12 = arith.constant 0 : index
    %18 = vector.load %arg5[%c0_11, %c0_12] : memref<1x32xf32, #tpu.memory_space<vmem>>, vector<1x32xf32>
    %19 = vector.broadcast %18 : vector<1x32xf32> to vector<128x32xf32>
    %20 = arith.addf %17, %19 : vector<128x32xf32>
    %c0_13 = arith.constant 0 : index
    %c0_14 = arith.constant 0 : index
    %21 = vector.load %arg6[%c0_13, %c0_14] : memref<128x32xf32, #tpu.memory_space<vmem>>, vector<128x32xf32>
    tpu.vector_store %arg6[%c0_13, %c0_14], %20 {strides = array<i32>} : memref<128x32xf32, #tpu.memory_space<vmem>>, vector<128x32xf32>,
    return
  }
  func.func @transform_0(%arg0: i32) -> (i32, i32) {
    %c0_i32 = arith.constant 0 : i32
    %c0_i32_0 = arith.constant 0 : i32
    return %arg0, %c0_i32 : i32, i32
  }
  func.func @transform_1(%arg0: i32) -> (i32, i32) {
    %c0_i32 = arith.constant 0 : i32
    %c0_i32_0 = arith.constant 0 : i32
    %c0_i32_1 = arith.constant 0 : i32
    return %c0_i32, %c0_i32_0 : i32, i32
  }
  func.func @transform_2(%arg0: i32) -> (i32, i32) {
    %c0_i32 = arith.constant 0 : i32
    %c0_i32_0 = arith.constant 0 : i32
    %c0_i32_1 = arith.constant 0 : i32
    return %c0_i32, %c0_i32_0 : i32, i32
  }
  func.func @transform_3(%arg0: i32) -> (i32, i32) {
    %c0_i32 = arith.constant 0 : i32
    %c0_i32_0 = arith.constant 0 : i32
    %c0_i32_1 = arith.constant 0 : i32
    return %c0_i32, %c0_i32_0 : i32, i32
  }
  func.func @transform_4(%arg0: i32) -> (i32, i32) {
    %c0_i32 = arith.constant 0 : i32
    %c0_i32_0 = arith.constant 0 : i32
    %c0_i32_1 = arith.constant 0 : i32
    return %c0_i32, %c0_i32_0 : i32, i32
  }
  func.func @transform_5(%arg0: i32) -> (i32, i32) {
    %c0_i32 = arith.constant 0 : i32
    %c0_i32_0 = arith.constant 0 : i32
    return %arg0, %c0_i32 : i32, i32
  }
}

</mosaic_0001>

<llo_original>
// kernel: mlp_forward.1
$region0: #{mlp_forward.1}
  #allocation0 [shape = 'u32[]', space=smem, size = 0x4, offset = 0x4, fixed_abs, tag = 'smem constant byte address 0x4 - core index']
  #allocation1 [shape = 'u32[72,128]{1,0:T(1,128)}', space=vmem, size = 0x9000, scoped, tag = 'internal scratch']
  %s0 = inlined_call_operand.vmem [shape: f32[128,32], index: 0, kind: input, shape index: {}]
  %s1 = inlined_call_operand.vmem [shape: bf16[32,128], index: 1, kind: input, shape index: {}]
  %s2 = inlined_call_operand.vmem [shape: f32[1,128], index: 2, kind: input, shape index: {}]
  %s3 = inlined_call_operand.vmem [shape: bf16[128,32], index: 3, kind: input, shape index: {}]
  %s4 = inlined_call_operand.vmem [shape: f32[1,32], index: 4, kind: input, shape index: {}]
  %s5 = inlined_call_operand.vmem [shape: f32[128,32], index: 5, kind: output, shape index: {}]
  %s6 = sld [smem:[#allocation0]]
  $region30: #{mlp_forward.1} parent=0
    _
  %s8 = ssub.s32 1, %s6
  %s9 = scalar_select 0, %s8, %s6
  // Predicated region
  $region2: #{mlp_forward.1} parent=0 // pred_check
    _
  $region3: #{mlp_forward.1} parent=0 // pred_check_branch
    %11 = sbr.rel (0) target = $region5
  $region4: #{mlp_forward.1} parent=0 // pred_region
    _
  $region5: #{mlp_forward.1} parent=0 // pred_fallthru
    _
  // Predicated region
  $region6: #{mlp_forward.1} parent=0 // pred_check
    _
  $region7: #{mlp_forward.1} parent=0 // pred_check_branch
    %13 = sbr.rel (0) target = $region9
  $region8: #{mlp_forward.1} parent=0 // pred_region
    _
  $region9: #{mlp_forward.1} parent=0 // pred_fallthru
    _
  // Predicated region
  $region10: #{mlp_forward.1} parent=0 // pred_check
    _
  $region11: #{mlp_forward.1} parent=0 // pred_check_branch
    %15 = sbr.rel (0) target = $region13
  $region12: #{mlp_forward.1} parent=0 // pred_region
    _
  $region13: #{mlp_forward.1} parent=0 // pred_fallthru
    _
  // Predicated region
  $region14: #{mlp_forward.1} parent=0 // pred_check
    _
  $region15: #{mlp_forward.1} parent=0 // pred_check_branch
    %17 = sbr.rel (0) target = $region17
  $region16: #{mlp_forward.1} parent=0 // pred_region
    _
  $region17: #{mlp_forward.1} parent=0 // pred_fallthru
    _
  // Predicated region
  $region18: #{mlp_forward.1} parent=0 // pred_check
    _
  $region19: #{mlp_forward.1} parent=0 // pred_check_branch
    %19 = sbr.rel (0) target = $region21
  $region20: #{mlp_forward.1} parent=0 // pred_region
    _
  $region21: #{mlp_forward.1} parent=0 // pred_fallthru
    _
  %v21 = vld [vmem:[%s0] sm:$0xff]
  %v22 = vld [vmem:[%s0 + $0x8] sm:$0xff]
  %v23 = vld [vmem:[%s0 + $0x10] sm:$0xff]
  %v24 = vld [vmem:[%s0 + $0x18] sm:$0xff]
  %v25 = vld [vmem:[%s0 + $0x20] sm:$0xff]
  %v26 = vld [vmem:[%s0 + $0x28] sm:$0xff]
  %v27 = vld [vmem:[%s0 + $0x30] sm:$0xff]
  %v28 = vld [vmem:[%s0 + $0x38] sm:$0xff]
  %v29 = vld [vmem:[%s0 + $0x40] sm:$0xff]
  %v30 = vld [vmem:[%s0 + $0x48] sm:$0xff]
  %v31 = vld [vmem:[%s0 + $0x50] sm:$0xff]
  %v32 = vld [vmem:[%s0 + $0x58] sm:$0xff]
  %v33 = vld [vmem:[%s0 + $0x60] sm:$0xff]
  %v34 = vld [vmem:[%s0 + $0x68] sm:$0xff]
  %v35 = vld [vmem:[%s0 + $0x70] sm:$0xff]
  %v36 = vld [vmem:[%s0 + $0x78] sm:$0xff]
  %v37 = vpack.c.bf16 %v22, %v21
  %v38 = vpack.c.bf16 %v24, %v23
  %v39 = vpack.c.bf16 %v26, %v25
  %v40 = vpack.c.bf16 %v28, %v27
  %v41 = vpack.c.bf16 %v30, %v29
  %v42 = vpack.c.bf16 %v32, %v31
  %v43 = vpack.c.bf16 %v34, %v33
  %v44 = vpack.c.bf16 %v36, %v35
  %v45 = vld [vmem:[%s1] sm:$0xf]
  %v46 = vld [vmem:[%s1 + $0x4] sm:$0xf]
  %v47 = vld [vmem:[%s1 + $0x8] sm:$0xf]
  %v48 = vld [vmem:[%s1 + $0xc] sm:$0xf]
  %v49 = vld [vmem:[%s2] sm:$0x1]
  %v51 = vperm.slane %v49, 0
  %v57 = vunpack.c.l.b16 %v45
  %v58 = vunpack.c.l.b16 %v46
  %v59 = vunpack.c.l.b16 %v47
  %v60 = vunpack.c.l.b16 %v48
  %v61 = vpack.c.b16 %v58, %v57
  %v62 = vpack.c.b16 %v60, %v59
  %vm65 = vcmask 261120
  %v67 = vsel %vm65, %v37, 0
  %v70 = vsel %vm65, %v38, 0
  %v73 = vsel %vm65, %v39, 0
  %v76 = vsel %vm65, %v40, 0
  %v79 = vsel %vm65, %v41, 0
  %v82 = vsel %vm65, %v42, 0
  %v85 = vsel %vm65, %v43, 0
  %v88 = vsel %vm65, %v44, 0
  %90 = vmatpush.bf16.msra.mxu0 0
  %91 = vmatpush.bf16.msra.mxu0 0
  %92 = vmatpush.bf16.msra.mxu0 0
  %93 = vmatpush.bf16.msra.mxu0 0
  %94 = vmatpush.bf16.msra.mxu0 0
  %95 = vmatpush.bf16.msra.mxu0 0
  %96 = vmatpush.bf16.msra.mxu0 %v62
  %97 = vmatpush.bf16.msra.mxu0 %v61
  %98 = vmatmul.bf16.gmra.mxu0 %v67
  %v99 = vpop.f32.mrf.mxu0
  %v100 = vadd.f32 %v51, %v99
  %v101 = vpop.f32.mrf.mxu0
  %v102 = vadd.f32 %v51, %v101
  %103 = vmatmul.bf16.gmra.mxu0 %v70
  %v104 = vpop.f32.mrf.mxu0
  %v105 = vadd.f32 %v51, %v104
  %v106 = vpop.f32.mrf.mxu0
  %v107 = vadd.f32 %v51, %v106
  %108 = vmatmul.bf16.gmra.mxu0 %v73
  %v109 = vpop.f32.mrf.mxu0
  %v110 = vadd.f32 %v51, %v109
  %v111 = vpop.f32.mrf.mxu0
  %v112 = vadd.f32 %v51, %v111
  %113 = vmatmul.bf16.gmra.mxu0 %v76
  %v114 = vpop.f32.mrf.mxu0
  %v115 = vadd.f32 %v51, %v114
  %v116 = vpop.f32.mrf.mxu0
  %v117 = vadd.f32 %v51, %v116
  %118 = vmatmul.bf16.gmra.mxu0 %v79
  %v119 = vpop.f32.mrf.mxu0
  %v120 = vadd.f32 %v51, %v119
  %v121 = vpop.f32.mrf.mxu0
  %v122 = vadd.f32 %v51, %v121
  %123 = vmatmul.bf16.gmra.mxu0 %v82
  %v124 = vpop.f32.mrf.mxu0
  %v125 = vadd.f32 %v51, %v124
  %v126 = vpop.f32.mrf.mxu0
  %v127 = vadd.f32 %v51, %v126
  %128 = vmatmul.bf16.gmra.mxu0 %v85
  %v129 = vpop.f32.mrf.mxu0
  %v130 = vadd.f32 %v51, %v129
  %v131 = vpop.f32.mrf.mxu0
  %v132 = vadd.f32 %v51, %v131
  %133 = vmatmul.bf16.gmra.mxu0 %v88
  %v134 = vpop.f32.mrf.mxu0
  %v135 = vadd.f32 %v51, %v134
  %v136 = vpop.f32.mrf.mxu0
  %v137 = vadd.f32 %v51, %v136
  %138 = vdwg.mxu0
  %v139 = vmul.f32 %v100, 0.5
  %v140 = vmul.f32 %v102, 0.5
  %v141 = vmul.f32 %v105, 0.5
  %v142 = vmul.f32 %v107, 0.5
  %v143 = vmul.f32 %v110, 0.5
  %v144 = vmul.f32 %v112, 0.5
  %v145 = vmul.f32 %v115, 0.5
  %v146 = vmul.f32 %v117, 0.5
  %v147 = vmul.f32 %v120, 0.5
  %v148 = vmul.f32 %v122, 0.5
  %v149 = vmul.f32 %v125, 0.5
  %v150 = vmul.f32 %v127, 0.5
  %v151 = vmul.f32 %v130, 0.5
  %v152 = vmul.f32 %v132, 0.5
  %v153 = vmul.f32 %v135, 0.5
  %v154 = vmul.f32 %v137, 0.5
  %v155 = vmul.f32 %v100, 0.70710677
  %v156 = vmul.f32 %v102, 0.70710677
  %v157 = vmul.f32 %v105, 0.70710677
  %v158 = vmul.f32 %v107, 0.70710677
  %v159 = vmul.f32 %v110, 0.70710677
  %v160 = vmul.f32 %v112, 0.70710677
  %v161 = vmul.f32 %v115, 0.70710677
  %v162 = vmul.f32 %v117, 0.70710677
  %v163 = vmul.f32 %v120, 0.70710677
  %v164 = vmul.f32 %v122, 0.70710677
  %v165 = vmul.f32 %v125, 0.70710677
  %v166 = vmul.f32 %v127, 0.70710677
  %v167 = vmul.f32 %v130, 0.70710677
  %v168 = vmul.f32 %v132, 0.70710677
  %v169 = vmul.f32 %v135, 0.70710677
  %v170 = vmul.f32 %v137, 0.70710677
  %v171 = vmul.f32 %v155, %v155
  %v172 = vmin.f32 16.0, %v171
  %v173 = vmul.f32 %v172, 2.1237322e-06
  %v174 = vadd.f32 %v173, 0.00028619796
  %v175 = vmul.f32 %v172, %v174
  %v176 = vadd.f32 %v175, 0.0036580483
  %v177 = vmul.f32 %v172, %v176
  %v178 = vadd.f32 %v177, 0.05243302
  %v179 = vmul.f32 %v172, %v178
  %v180 = vadd.f32 %v179, 0.18741608
  %v181 = vmul.f32 %v172, %v180
  %v182 = vadd.f32 %v181, 1.1283791
  %v183 = vmul.f32 %v155, %v182
  %v184 = vmul.f32 %v172, 3.8918573e-05
  %v185 = vadd.f32 %v184, 0.001143296
  %v186 = vmul.f32 %v172, %v185
  %v187 = vadd.f32 %v186, 0.014752088
  %v188 = vmul.f32 %v172, %v187
  %v189 = vadd.f32 %v188, 0.112945676
  %v190 = vmul.f32 %v172, %v189
  %v191 = vadd.f32 %v190, 0.4994258
  %v192 = vmul.f32 %v172, %v191
  %v193 = vadd.f32 %v192, 1.0
  %v194 = vrcp.pop %v193
  %v195 = vmul.f32 %v193, %v194
  %v196 = vsub.f32 1.0, %v195
  %v197 = vmul.f32 %v194, %v196
  %v198 = vadd.f32 %v194, %v197
  %vm199 = vweird.f32 %v193
  %vm200 = vweird.f32 %v194
  %vm201 = vmor %vm199, %vm200
  %v202 = vsel %vm201, %v194, %v198
  %v203 = vand.u32 2147483647, %v193
  %vm204 = vcmp.eq.f32.partialorder %v203, 8.507059e+37
  %v205 = vand.u32 %v193, 2147483648
  %v206 = vor.u32 1.1754944e-38, %v205
  %v207 = vsel %vm204, %v206, %v202
  %v208 = vmul.f32 %v183, %v207
  %v209 = vmin.f32 %v208, 1.0
  %v210 = vmax.f32 %v209, -1.0
  %v211 = vmul.f32 %v156, %v156
  %v212 = vmin.f32 16.0, %v211
  %v213 = vmul.f32 %v212, 2.1237322e-06
  %v214 = vadd.f32 %v213, 0.00028619796
  %v215 = vmul.f32 %v212, %v214
  %v216 = vadd.f32 %v215, 0.0036580483
  %v217 = vmul.f32 %v212, %v216
  %v218 = vadd.f32 %v217, 0.05243302
  %v219 = vmul.f32 %v212, %v218
  %v220 = vadd.f32 %v219, 0.18741608
  %v221 = vmul.f32 %v212, %v220
  %v222 = vadd.f32 %v221, 1.1283791
  %v223 = vmul.f32 %v156, %v222
  %v224 = vmul.f32 %v212, 3.8918573e-05
  %v225 = vadd.f32 %v224, 0.001143296
  %v226 = vmul.f32 %v212, %v225
  %v227 = vadd.f32 %v226, 0.014752088
  %v228 = vmul.f32 %v212, %v227
  %v229 = vadd.f32 %v228, 0.112945676
  %v230 = vmul.f32 %v212, %v229
  %v231 = vadd.f32 %v230, 0.4994258
  %v232 = vmul.f32 %v212, %v231
  %v233 = vadd.f32 %v232, 1.0
  %v234 = vrcp.pop %v233
  %v235 = vmul.f32 %v233, %v234
  %v236 = vsub.f32 1.0, %v235
  %v237 = vmul.f32 %v234, %v236
  %v238 = vadd.f32 %v234, %v237
  %vm239 = vweird.f32 %v233
  %vm240 = vweird.f32 %v234
  %vm241 = vmor %vm239, %vm240
  %v242 = vsel %vm241, %v234, %v238
  %v243 = vand.u32 2147483647, %v233
  %vm244 = vcmp.eq.f32.partialorder %v243, 8.507059e+37
  %v245 = vand.u32 %v233, 2147483648
  %v246 = vor.u32 1.1754944e-38, %v245
  %v247 = vsel %vm244, %v246, %v242
  %v248 = vmul.f32 %v223, %v247
  %v249 = vmin.f32 %v248, 1.0
  %v250 = vmax.f32 %v249, -1.0
  %v251 = vmul.f32 %v157, %v157
  %v252 = vmin.f32 16.0, %v251
  %v253 = vmul.f32 %v252, 2.1237322e-06
  %v254 = vadd.f32 %v253, 0.00028619796
  %v255 = vmul.f32 %v252, %v254
  %v256 = vadd.f32 %v255, 0.0036580483
  %v257 = vmul.f32 %v252, %v256
  %v258 = vadd.f32 %v257, 0.05243302
  %v259 = vmul.f32 %v252, %v258
  %v260 = vadd.f32 %v259, 0.18741608
  %v261 = vmul.f32 %v252, %v260
  %v262 = vadd.f32 %v261, 1.1283791
  %v263 = vmul.f32 %v157, %v262
  %v264 = vmul.f32 %v252, 3.8918573e-05
  %v265 = vadd.f32 %v264, 0.001143296
  %v266 = vmul.f32 %v252, %v265
  %v267 = vadd.f32 %v266, 0.014752088
  %v268 = vmul.f32 %v252, %v267
  %v269 = vadd.f32 %v268, 0.112945676
  %v270 = vmul.f32 %v252, %v269
  %v271 = vadd.f32 %v270, 0.4994258
  %v272 = vmul.f32 %v252, %v271
  %v273 = vadd.f32 %v272, 1.0
  %v274 = vrcp.pop %v273
  %v275 = vmul.f32 %v273, %v274
  %v276 = vsub.f32 1.0, %v275
  %v277 = vmul.f32 %v274, %v276
  %v278 = vadd.f32 %v274, %v277
  %vm279 = vweird.f32 %v273
  %vm280 = vweird.f32 %v274
  %vm281 = vmor %vm279, %vm280
  %v282 = vsel %vm281, %v274, %v278
  %v283 = vand.u32 2147483647, %v273
  %vm284 = vcmp.eq.f32.partialorder %v283, 8.507059e+37
  %v285 = vand.u32 %v273, 2147483648
  %v286 = vor.u32 1.1754944e-38, %v285
  %v287 = vsel %vm284, %v286, %v282
  %v288 = vmul.f32 %v263, %v287
  %v289 = vmin.f32 %v288, 1.0
  %v290 = vmax.f32 %v289, -1.0
  %v291 = vmul.f32 %v158, %v158
  %v292 = vmin.f32 16.0, %v291
  %v293 = vmul.f32 %v292, 2.1237322e-06
  %v294 = vadd.f32 %v293, 0.00028619796
  %v295 = vmul.f32 %v292, %v294
  %v296 = vadd.f32 %v295, 0.0036580483
  %v297 = vmul.f32 %v292, %v296
  %v298 = vadd.f32 %v297, 0.05243302
  %v299 = vmul.f32 %v292, %v298
  %v300 = vadd.f32 %v299, 0.18741608
  %v301 = vmul.f32 %v292, %v300
  %v302 = vadd.f32 %v301, 1.1283791
  %v303 = vmul.f32 %v158, %v302
  %v304 = vmul.f32 %v292, 3.8918573e-05
  %v305 = vadd.f32 %v304, 0.001143296
  %v306 = vmul.f32 %v292, %v305
  %v307 = vadd.f32 %v306, 0.014752088
  %v308 = vmul.f32 %v292, %v307
  %v309 = vadd.f32 %v308, 0.112945676
  %v310 = vmul.f32 %v292, %v309
  %v311 = vadd.f32 %v310, 0.4994258
  %v312 = vmul.f32 %v292, %v311
  %v313 = vadd.f32 %v312, 1.0
  %v314 = vrcp.pop %v313
  %v315 = vmul.f32 %v313, %v314
  %v316 = vsub.f32 1.0, %v315
  %v317 = vmul.f32 %v314, %v316
  %v318 = vadd.f32 %v314, %v317
  %vm319 = vweird.f32 %v313
  %vm320 = vweird.f32 %v314
  %vm321 = vmor %vm319, %vm320
  %v322 = vsel %vm321, %v314, %v318
  %v323 = vand.u32 2147483647, %v313
  %vm324 = vcmp.eq.f32.partialorder %v323, 8.507059e+37
  %v325 = vand.u32 %v313, 2147483648
  %v326 = vor.u32 1.1754944e-38, %v325
  %v327 = vsel %vm324, %v326, %v322
  %v328 = vmul.f32 %v303, %v327
  %v329 = vmin.f32 %v328, 1.0
  %v330 = vmax.f32 %v329, -1.0
  %v331 = vmul.f32 %v159, %v159
  %v332 = vmin.f32 16.0, %v331
  %v333 = vmul.f32 %v332, 2.1237322e-06
  %v334 = vadd.f32 %v333, 0.00028619796
  %v335 = vmul.f32 %v332, %v334
  %v336 = vadd.f32 %v335, 0.0036580483
  %v337 = vmul.f32 %v332, %v336
  %v338 = vadd.f32 %v337, 0.05243302
  %v339 = vmul.f32 %v332, %v338
  %v340 = vadd.f32 %v339, 0.18741608
  %v341 = vmul.f32 %v332, %v340
  %v342 = vadd.f32 %v341, 1.1283791
  %v343 = vmul.f32 %v159, %v342
  %v344 = vmul.f32 %v332, 3.8918573e-05
  %v345 = vadd.f32 %v344, 0.001143296
  %v346 = vmul.f32 %v332, %v345
  %v347 = vadd.f32 %v346, 0.014752088
  %v348 = vmul.f32 %v332, %v347
  %v349 = vadd.f32 %v348, 0.112945676
  %v350 = vmul.f32 %v332, %v349
  %v351 = vadd.f32 %v350, 0.4994258
  %v352 = vmul.f32 %v332, %v351
  %v353 = vadd.f32 %v352, 1.0
  %v354 = vrcp.pop %v353
  %v355 = vmul.f32 %v353, %v354
  %v356 = vsub.f32 1.0, %v355
  %v357 = vmul.f32 %v354, %v356
  %v358 = vadd.f32 %v354, %v357
  %vm359 = vweird.f32 %v353
  %vm360 = vweird.f32 %v354
  %vm361 = vmor %vm359, %vm360
  %v362 = vsel %vm361, %v354, %v358
  %v363 = vand.u32 2147483647, %v353
  %vm364 = vcmp.eq.f32.partialorder %v363, 8.507059e+37
  %v365 = vand.u32 %v353, 2147483648
  %v366 = vor.u32 1.1754944e-38, %v365
  %v367 = vsel %vm364, %v366, %v362
  %v368 = vmul.f32 %v343, %v367
  %v369 = vmin.f32 %v368, 1.0
  %v370 = vmax.f32 %v369, -1.0
  %v371 = vmul.f32 %v160, %v160
  %v372 = vmin.f32 16.0, %v371
  %v373 = vmul.f32 %v372, 2.1237322e-06
  %v374 = vadd.f32 %v373, 0.00028619796
  %v375 = vmul.f32 %v372, %v374
  %v376 = vadd.f32 %v375, 0.0036580483
  %v377 = vmul.f32 %v372, %v376
  %v378 = vadd.f32 %v377, 0.05243302
  %v379 = vmul.f32 %v372, %v378
  %v380 = vadd.f32 %v379, 0.18741608
  %v381 = vmul.f32 %v372, %v380
  %v382 = vadd.f32 %v381, 1.1283791
  %v383 = vmul.f32 %v160, %v382
  %v384 = vmul.f32 %v372, 3.8918573e-05
  %v385 = vadd.f32 %v384, 0.001143296
  %v386 = vmul.f32 %v372, %v385
  %v387 = vadd.f32 %v386, 0.014752088
  %v388 = vmul.f32 %v372, %v387
  %v389 = vadd.f32 %v388, 0.112945676
  %v390 = vmul.f32 %v372, %v389
  %v391 = vadd.f32 %v390, 0.4994258
  %v392 = vmul.f32 %v372, %v391
  %v393 = vadd.f32 %v392, 1.0
  %v394 = vrcp.pop %v393
  %v395 = vmul.f32 %v393, %v394
  %v396 = vsub.f32 1.0, %v395
  %v397 = vmul.f32 %v394, %v396
  %v398 = vadd.f32 %v394, %v397
  %vm399 = vweird.f32 %v393
  %vm400 = vweird.f32 %v394
  %vm401 = vmor %vm399, %vm400
  %v402 = vsel %vm401, %v394, %v398
  %v403 = vand.u32 2147483647, %v393
  %vm404 = vcmp.eq.f32.partialorder %v403, 8.507059e+37
  %v405 = vand.u32 %v393, 2147483648
  %v406 = vor.u32 1.1754944e-38, %v405
  %v407 = vsel %vm404, %v406, %v402
  %v408 = vmul.f32 %v383, %v407
  %v409 = vmin.f32 %v408, 1.0
  %v410 = vmax.f32 %v409, -1.0
  %v411 = vmul.f32 %v161, %v161
  %v412 = vmin.f32 16.0, %v411
  %v413 = vmul.f32 %v412, 2.1237322e-06
  %v414 = vadd.f32 %v413, 0.00028619796
  %v415 = vmul.f32 %v412, %v414
  %v416 = vadd.f32 %v415, 0.0036580483
  %v417 = vmul.f32 %v412, %v416
  %v418 = vadd.f32 %v417, 0.05243302
  %v419 = vmul.f32 %v412, %v418
  %v420 = vadd.f32 %v419, 0.18741608
  %v421 = vmul.f32 %v412, %v420
  %v422 = vadd.f32 %v421, 1.1283791
  %v423 = vmul.f32 %v161, %v422
  %v424 = vmul.f32 %v412, 3.8918573e-05
  %v425 = vadd.f32 %v424, 0.001143296
  %v426 = vmul.f32 %v412, %v425
  %v427 = vadd.f32 %v426, 0.014752088
  %v428 = vmul.f32 %v412, %v427
  %v429 = vadd.f32 %v428, 0.112945676
  %v430 = vmul.f32 %v412, %v429
  %v431 = vadd.f32 %v430, 0.4994258
  %v432 = vmul.f32 %v412, %v431
  %v433 = vadd.f32 %v432, 1.0
  %v434 = vrcp.pop %v433
  %v435 = vmul.f32 %v433, %v434
  %v436 = vsub.f32 1.0, %v435
  %v437 = vmul.f32 %v434, %v436
  %v438 = vadd.f32 %v434, %v437
  %vm439 = vweird.f32 %v433
  %vm440 = vweird.f32 %v434
  %vm441 = vmor %vm439, %vm440
  %v442 = vsel %vm441, %v434, %v438
  %v443 = vand.u32 2147483647, %v433
  %vm444 = vcmp.eq.f32.partialorder %v443, 8.507059e+37
  %v445 = vand.u32 %v433, 2147483648
  %v446 = vor.u32 1.1754944e-38, %v445
  %v447 = vsel %vm444, %v446, %v442
  %v448 = vmul.f32 %v423, %v447
  %v449 = vmin.f32 %v448, 1.0
  %v450 = vmax.f32 %v449, -1.0
  %v451 = vmul.f32 %v162, %v162
  %v452 = vmin.f32 16.0, %v451
  %v453 = vmul.f32 %v452, 2.1237322e-06
  %v454 = vadd.f32 %v453, 0.00028619796
  %v455 = vmul.f32 %v452, %v454
  %v456 = vadd.f32 %v455, 0.0036580483
  %v457 = vmul.f32 %v452, %v456
  %v458 = vadd.f32 %v457, 0.05243302
  %v459 = vmul.f32 %v452, %v458
  %v460 = vadd.f32 %v459, 0.18741608
  %v461 = vmul.f32 %v452, %v460
  %v462 = vadd.f32 %v461, 1.1283791
  %v463 = vmul.f32 %v162, %v462
  %v464 = vmul.f32 %v452, 3.8918573e-05
  %v465 = vadd.f32 %v464, 0.001143296
  %v466 = vmul.f32 %v452, %v465
  %v467 = vadd.f32 %v466, 0.014752088
  %v468 = vmul.f32 %v452, %v467
  %v469 = vadd.f32 %v468, 0.112945676
  %v470 = vmul.f32 %v452, %v469
  %v471 = vadd.f32 %v470, 0.4994258
  %v472 = vmul.f32 %v452, %v471
  %v473 = vadd.f32 %v472, 1.0
  %v474 = vrcp.pop %v473
  %v475 = vmul.f32 %v473, %v474
  %v476 = vsub.f32 1.0, %v475
  %v477 = vmul.f32 %v474, %v476
  %v478 = vadd.f32 %v474, %v477
  %vm479 = vweird.f32 %v473
  %vm480 = vweird.f32 %v474
  %vm481 = vmor %vm479, %vm480
  %v482 = vsel %vm481, %v474, %v478
  %v483 = vand.u32 2147483647, %v473
  %vm484 = vcmp.eq.f32.partialorder %v483, 8.507059e+37
  %v485 = vand.u32 %v473, 2147483648
  %v486 = vor.u32 1.1754944e-38, %v485
  %v487 = vsel %vm484, %v486, %v482
  %v488 = vmul.f32 %v463, %v487
  %v489 = vmin.f32 %v488, 1.0
  %v490 = vmax.f32 %v489, -1.0
  %v491 = vmul.f32 %v163, %v163
  %v492 = vmin.f32 16.0, %v491
  %v493 = vmul.f32 %v492, 2.1237322e-06
  %v494 = vadd.f32 %v493, 0.00028619796
  %v495 = vmul.f32 %v492, %v494
  %v496 = vadd.f32 %v495, 0.0036580483
  %v497 = vmul.f32 %v492, %v496
  %v498 = vadd.f32 %v497, 0.05243302
  %v499 = vmul.f32 %v492, %v498
  %v500 = vadd.f32 %v499, 0.18741608
  %v501 = vmul.f32 %v492, %v500
  %v502 = vadd.f32 %v501, 1.1283791
  %v503 = vmul.f32 %v163, %v502
  %v504 = vmul.f32 %v492, 3.8918573e-05
  %v505 = vadd.f32 %v504, 0.001143296
  %v506 = vmul.f32 %v492, %v505
  %v507 = vadd.f32 %v506, 0.014752088
  %v508 = vmul.f32 %v492, %v507
  %v509 = vadd.f32 %v508, 0.112945676
  %v510 = vmul.f32 %v492, %v509
  %v511 = vadd.f32 %v510, 0.4994258
  %v512 = vmul.f32 %v492, %v511
  %v513 = vadd.f32 %v512, 1.0
  %v514 = vrcp.pop %v513
  %v515 = vmul.f32 %v513, %v514
  %v516 = vsub.f32 1.0, %v515
  %v517 = vmul.f32 %v514, %v516
  %v518 = vadd.f32 %v514, %v517
  %vm519 = vweird.f32 %v513
  %vm520 = vweird.f32 %v514
  %vm521 = vmor %vm519, %vm520
  %v522 = vsel %vm521, %v514, %v518
  %v523 = vand.u32 2147483647, %v513
  %vm524 = vcmp.eq.f32.partialorder %v523, 8.507059e+37
  %v525 = vand.u32 %v513, 2147483648
  %v526 = vor.u32 1.1754944e-38, %v525
  %v527 = vsel %vm524, %v526, %v522
  %v528 = vmul.f32 %v503, %v527
  %v529 = vmin.f32 %v528, 1.0
  %v530 = vmax.f32 %v529, -1.0
  %v531 = vmul.f32 %v164, %v164
  %v532 = vmin.f32 16.0, %v531
  %v533 = vmul.f32 %v532, 2.1237322e-06
  %v534 = vadd.f32 %v533, 0.00028619796
  %v535 = vmul.f32 %v532, %v534
  %v536 = vadd.f32 %v535, 0.0036580483
  %v537 = vmul.f32 %v532, %v536
  %v538 = vadd.f32 %v537, 0.05243302
  %v539 = vmul.f32 %v532, %v538
  %v540 = vadd.f32 %v539, 0.18741608
  %v541 = vmul.f32 %v532, %v540
  %v542 = vadd.f32 %v541, 1.1283791
  %v543 = vmul.f32 %v164, %v542
  %v544 = vmul.f32 %v532, 3.8918573e-05
  %v545 = vadd.f32 %v544, 0.001143296
  %v546 = vmul.f32 %v532, %v545
  %v547 = vadd.f32 %v546, 0.014752088
  %v548 = vmul.f32 %v532, %v547
  %v549 = vadd.f32 %v548, 0.112945676
  %v550 = vmul.f32 %v532, %v549
  %v551 = vadd.f32 %v550, 0.4994258
  %v552 = vmul.f32 %v532, %v551
  %v553 = vadd.f32 %v552, 1.0
  %v554 = vrcp.pop %v553
  %v555 = vmul.f32 %v553, %v554
  %v556 = vsub.f32 1.0, %v555
  %v557 = vmul.f32 %v554, %v556
  %v558 = vadd.f32 %v554, %v557
  %vm559 = vweird.f32 %v553
  %vm560 = vweird.f32 %v554
  %vm561 = vmor %vm559, %vm560
  %v562 = vsel %vm561, %v554, %v558
  %v563 = vand.u32 2147483647, %v553
  %vm564 = vcmp.eq.f32.partialorder %v563, 8.507059e+37
  %v565 = vand.u32 %v553, 2147483648
  %v566 = vor.u32 1.1754944e-38, %v565
  %v567 = vsel %vm564, %v566, %v562
  %v568 = vmul.f32 %v543, %v567
  %v569 = vmin.f32 %v568, 1.0
  %v570 = vmax.f32 %v569, -1.0
  %v571 = vmul.f32 %v165, %v165
  %v572 = vmin.f32 16.0, %v571
  %v573 = vmul.f32 %v572, 2.1237322e-06
  %v574 = vadd.f32 %v573, 0.00028619796
  %v575 = vmul.f32 %v572, %v574
  %v576 = vadd.f32 %v575, 0.0036580483
  %v577 = vmul.f32 %v572, %v576
  %v578 = vadd.f32 %v577, 0.05243302
  %v579 = vmul.f32 %v572, %v578
  %v580 = vadd.f32 %v579, 0.18741608
  %v581 = vmul.f32 %v572, %v580
  %v582 = vadd.f32 %v581, 1.1283791
  %v583 = vmul.f32 %v165, %v582
  %v584 = vmul.f32 %v572, 3.8918573e-05
  %v585 = vadd.f32 %v584, 0.001143296
  %v586 = vmul.f32 %v572, %v585
  %v587 = vadd.f32 %v586, 0.014752088
  %v588 = vmul.f32 %v572, %v587
  %v589 = vadd.f32 %v588, 0.112945676
  %v590 = vmul.f32 %v572, %v589
  %v591 = vadd.f32 %v590, 0.4994258
  %v592 = vmul.f32 %v572, %v591
  %v593 = vadd.f32 %v592, 1.0
  %v594 = vrcp.pop %v593
  %v595 = vmul.f32 %v593, %v594
  %v596 = vsub.f32 1.0, %v595
  %v597 = vmul.f32 %v594, %v596
  %v598 = vadd.f32 %v594, %v597
  %vm599 = vweird.f32 %v593
  %vm600 = vweird.f32 %v594
  %vm601 = vmor %vm599, %vm600
  %v602 = vsel %vm601, %v594, %v598
  %v603 = vand.u32 2147483647, %v593
  %vm604 = vcmp.eq.f32.partialorder %v603, 8.507059e+37
  %v605 = vand.u32 %v593, 2147483648
  %v606 = vor.u32 1.1754944e-38, %v605
  %v607 = vsel %vm604, %v606, %v602
  %v608 = vmul.f32 %v583, %v607
  %v609 = vmin.f32 %v608, 1.0
  %v610 = vmax.f32 %v609, -1.0
  %v611 = vmul.f32 %v166, %v166
  %v612 = vmin.f32 16.0, %v611
  %v613 = vmul.f32 %v612, 2.1237322e-06
  %v614 = vadd.f32 %v613, 0.00028619796
  %v615 = vmul.f32 %v612, %v614
  %v616 = vadd.f32 %v615, 0.0036580483
  %v617 = vmul.f32 %v612, %v616
  %v618 = vadd.f32 %v617, 0.05243302
  %v619 = vmul.f32 %v612, %v618
  %v620 = vadd.f32 %v619, 0.18741608
  %v621 = vmul.f32 %v612, %v620
  %v622 = vadd.f32 %v621, 1.1283791
  %v623 = vmul.f32 %v166, %v622
  %v624 = vmul.f32 %v612, 3.8918573e-05
  %v625 = vadd.f32 %v624, 0.001143296
  %v626 = vmul.f32 %v612, %v625
  %v627 = vadd.f32 %v626, 0.014752088
  %v628 = vmul.f32 %v612, %v627
  %v629 = vadd.f32 %v628, 0.112945676
  %v630 = vmul.f32 %v612, %v629
  %v631 = vadd.f32 %v630, 0.4994258
  %v632 = vmul.f32 %v612, %v631
  %v633 = vadd.f32 %v632, 1.0
  %v634 = vrcp.pop %v633
  %v635 = vmul.f32 %v633, %v634
  %v636 = vsub.f32 1.0, %v635
  %v637 = vmul.f32 %v634, %v636
  %v638 = vadd.f32 %v634, %v637
  %vm639 = vweird.f32 %v633
  %vm640 = vweird.f32 %v634
  %vm641 = vmor %vm639, %vm640
  %v642 = vsel %vm641, %v634, %v638
  %v643 = vand.u32 2147483647, %v633
  %vm644 = vcmp.eq.f32.partialorder %v643, 8.507059e+37
  %v645 = vand.u32 %v633, 2147483648
  %v646 = vor.u32 1.1754944e-38, %v645
  %v647 = vsel %vm644, %v646, %v642
  %v648 = vmul.f32 %v623, %v647
  %v649 = vmin.f32 %v648, 1.0
  %v650 = vmax.f32 %v649, -1.0
  %v651 = vmul.f32 %v167, %v167
  %v652 = vmin.f32 16.0, %v651
  %v653 = vmul.f32 %v652, 2.1237322e-06
  %v654 = vadd.f32 %v653, 0.00028619796
  %v655 = vmul.f32 %v652, %v654
  %v656 = vadd.f32 %v655, 0.0036580483
  %v657 = vmul.f32 %v652, %v656
  %v658 = vadd.f32 %v657, 0.05243302
  %v659 = vmul.f32 %v652, %v658
  %v660 = vadd.f32 %v659, 0.18741608
  %v661 = vmul.f32 %v652, %v660
  %v662 = vadd.f32 %v661, 1.1283791
  %v663 = vmul.f32 %v167, %v662
  %v664 = vmul.f32 %v652, 3.8918573e-05
  %v665 = vadd.f32 %v664, 0.001143296
  %v666 = vmul.f32 %v652, %v665
  %v667 = vadd.f32 %v666, 0.014752088
  %v668 = vmul.f32 %v652, %v667
  %v669 = vadd.f32 %v668, 0.112945676
  %v670 = vmul.f32 %v652, %v669
  %v671 = vadd.f32 %v670, 0.4994258
  %v672 = vmul.f32 %v652, %v671
  %v673 = vadd.f32 %v672, 1.0
  %v674 = vrcp.pop %v673
  %v675 = vmul.f32 %v673, %v674
  %v676 = vsub.f32 1.0, %v675
  %v677 = vmul.f32 %v674, %v676
  %v678 = vadd.f32 %v674, %v677
  %vm679 = vweird.f32 %v673
  %vm680 = vweird.f32 %v674
  %vm681 = vmor %vm679, %vm680
  %v682 = vsel %vm681, %v674, %v678
  %v683 = vand.u32 2147483647, %v673
  %vm684 = vcmp.eq.f32.partialorder %v683, 8.507059e+37
  %v685 = vand.u32 %v673, 2147483648
  %v686 = vor.u32 1.1754944e-38, %v685
  %v687 = vsel %vm684, %v686, %v682
  %v688 = vmul.f32 %v663, %v687
  %v689 = vmin.f32 %v688, 1.0
  %v690 = vmax.f32 %v689, -1.0
  %v691 = vmul.f32 %v168, %v168
  %v692 = vmin.f32 16.0, %v691
  %v693 = vmul.f32 %v692, 2.1237322e-06
  %v694 = vadd.f32 %v693, 0.00028619796
  %v695 = vmul.f32 %v692, %v694
  %v696 = vadd.f32 %v695, 0.0036580483
  %v697 = vmul.f32 %v692, %v696
  %v698 = vadd.f32 %v697, 0.05243302
  %v699 = vmul.f32 %v692, %v698
  %v700 = vadd.f32 %v699, 0.18741608
  %v701 = vmul.f32 %v692, %v700
  %v702 = vadd.f32 %v701, 1.1283791
  %v703 = vmul.f32 %v168, %v702
  %v704 = vmul.f32 %v692, 3.8918573e-05
  %v705 = vadd.f32 %v704, 0.001143296
  %v706 = vmul.f32 %v692, %v705
  %v707 = vadd.f32 %v706, 0.014752088
  %v708 = vmul.f32 %v692, %v707
  %v709 = vadd.f32 %v708, 0.112945676
  %v710 = vmul.f32 %v692, %v709
  %v711 = vadd.f32 %v710, 0.4994258
  %v712 = vmul.f32 %v692, %v711
  %v713 = vadd.f32 %v712, 1.0
  %v714 = vrcp.pop %v713
  %v715 = vmul.f32 %v713, %v714
  %v716 = vsub.f32 1.0, %v715
  %v717 = vmul.f32 %v714, %v716
  %v718 = vadd.f32 %v714, %v717
  %vm719 = vweird.f32 %v713
  %vm720 = vweird.f32 %v714
  %vm721 = vmor %vm719, %vm720
  %v722 = vsel %vm721, %v714, %v718
  %v723 = vand.u32 2147483647, %v713
  %vm724 = vcmp.eq.f32.partialorder %v723, 8.507059e+37
  %v725 = vand.u32 %v713, 2147483648
  %v726 = vor.u32 1.1754944e-38, %v725
  %v727 = vsel %vm724, %v726, %v722
  %v728 = vmul.f32 %v703, %v727
  %v729 = vmin.f32 %v728, 1.0
  %v730 = vmax.f32 %v729, -1.0
  %v731 = vmul.f32 %v169, %v169
  %v732 = vmin.f32 16.0, %v731
  %v733 = vmul.f32 %v732, 2.1237322e-06
  %v734 = vadd.f32 %v733, 0.00028619796
  %v735 = vmul.f32 %v732, %v734
  %v736 = vadd.f32 %v735, 0.0036580483
  %v737 = vmul.f32 %v732, %v736
  %v738 = vadd.f32 %v737, 0.05243302
  %v739 = vmul.f32 %v732, %v738
  %v740 = vadd.f32 %v739, 0.18741608
  %v741 = vmul.f32 %v732, %v740
  %v742 = vadd.f32 %v741, 1.1283791
  %v743 = vmul.f32 %v169, %v742
  %v744 = vmul.f32 %v732, 3.8918573e-05
  %v745 = vadd.f32 %v744, 0.001143296
  %v746 = vmul.f32 %v732, %v745
  %v747 = vadd.f32 %v746, 0.014752088
  %v748 = vmul.f32 %v732, %v747
  %v749 = vadd.f32 %v748, 0.112945676
  %v750 = vmul.f32 %v732, %v749
  %v751 = vadd.f32 %v750, 0.4994258
  %v752 = vmul.f32 %v732, %v751
  %v753 = vadd.f32 %v752, 1.0
  %v754 = vrcp.pop %v753
  %v755 = vmul.f32 %v753, %v754
  %v756 = vsub.f32 1.0, %v755
  %v757 = vmul.f32 %v754, %v756
  %v758 = vadd.f32 %v754, %v757
  %vm759 = vweird.f32 %v753
  %vm760 = vweird.f32 %v754
  %vm761 = vmor %vm759, %vm760
  %v762 = vsel %vm761, %v754, %v758
  %v763 = vand.u32 2147483647, %v753
  %vm764 = vcmp.eq.f32.partialorder %v763, 8.507059e+37
  %v765 = vand.u32 %v753, 2147483648
  %v766 = vor.u32 1.1754944e-38, %v765
  %v767 = vsel %vm764, %v766, %v762
  %v768 = vmul.f32 %v743, %v767
  %v769 = vmin.f32 %v768, 1.0
  %v770 = vmax.f32 %v769, -1.0
  %v771 = vmul.f32 %v170, %v170
  %v772 = vmin.f32 16.0, %v771
  %v773 = vmul.f32 %v772, 2.1237322e-06
  %v774 = vadd.f32 %v773, 0.00028619796
  %v775 = vmul.f32 %v772, %v774
  %v776 = vadd.f32 %v775, 0.0036580483
  %v777 = vmul.f32 %v772, %v776
  %v778 = vadd.f32 %v777, 0.05243302
  %v779 = vmul.f32 %v772, %v778
  %v780 = vadd.f32 %v779, 0.18741608
  %v781 = vmul.f32 %v772, %v780
  %v782 = vadd.f32 %v781, 1.1283791
  %v783 = vmul.f32 %v170, %v782
  %v784 = vmul.f32 %v772, 3.8918573e-05
  %v785 = vadd.f32 %v784, 0.001143296
  %v786 = vmul.f32 %v772, %v785
  %v787 = vadd.f32 %v786, 0.014752088
  %v788 = vmul.f32 %v772, %v787
  %v789 = vadd.f32 %v788, 0.112945676
  %v790 = vmul.f32 %v772, %v789
  %v791 = vadd.f32 %v790, 0.4994258
  %v792 = vmul.f32 %v772, %v791
  %v793 = vadd.f32 %v792, 1.0
  %v794 = vrcp.pop %v793
  %v795 = vmul.f32 %v793, %v794
  %v796 = vsub.f32 1.0, %v795
  %v797 = vmul.f32 %v794, %v796
  %v798 = vadd.f32 %v794, %v797
  %vm799 = vweird.f32 %v793
  %vm800 = vweird.f32 %v794
  %vm801 = vmor %vm799, %vm800
  %v802 = vsel %vm801, %v794, %v798
  %v803 = vand.u32 2147483647, %v793
  %vm804 = vcmp.eq.f32.partialorder %v803, 8.507059e+37
  %v805 = vand.u32 %v793, 2147483648
  %v806 = vor.u32 1.1754944e-38, %v805
  %v807 = vsel %vm804, %v806, %v802
  %v808 = vmul.f32 %v783, %v807
  %v809 = vmin.f32 %v808, 1.0
  %v810 = vmax.f32 %v809, -1.0
  %v811 = vadd.f32 %v210, 1.0
  %v812 = vadd.f32 %v250, 1.0
  %v813 = vadd.f32 %v290, 1.0
  %v814 = vadd.f32 %v330, 1.0
  %v815 = vadd.f32 %v370, 1.0
  %v816 = vadd.f32 %v410, 1.0
  %v817 = vadd.f32 %v450, 1.0
  %v818 = vadd.f32 %v490, 1.0
  %v819 = vadd.f32 %v530, 1.0
  %v820 = vadd.f32 %v570, 1.0
  %v821 = vadd.f32 %v610, 1.0
  %v822 = vadd.f32 %v650, 1.0
  %v823 = vadd.f32 %v690, 1.0
  %v824 = vadd.f32 %v730, 1.0
  %v825 = vadd.f32 %v770, 1.0
  %v826 = vadd.f32 %v810, 1.0
  %v827 = vmul.f32 %v139, %v811
  %v828 = vmul.f32 %v140, %v812
  %v829 = vmul.f32 %v141, %v813
  %v830 = vmul.f32 %v142, %v814
  %v831 = vmul.f32 %v143, %v815
  %v832 = vmul.f32 %v144, %v816
  %v833 = vmul.f32 %v145, %v817
  %v834 = vmul.f32 %v146, %v818
  %v835 = vmul.f32 %v147, %v819
  %v836 = vmul.f32 %v148, %v820
  %v837 = vmul.f32 %v149, %v821
  %v838 = vmul.f32 %v150, %v822
  %v839 = vmul.f32 %v151, %v823
  %v840 = vmul.f32 %v152, %v824
  %v841 = vmul.f32 %v153, %v825
  %v842 = vmul.f32 %v154, %v826
  %v843 = vpack.c.bf16 %v828, %v827
  %v844 = vpack.c.bf16 %v830, %v829
  %v845 = vpack.c.bf16 %v832, %v831
  %v846 = vpack.c.bf16 %v834, %v833
  %v847 = vpack.c.bf16 %v836, %v835
  %v848 = vpack.c.bf16 %v838, %v837
  %v849 = vpack.c.bf16 %v840, %v839
  %v850 = vpack.c.bf16 %v842, %v841
  %v851 = vld [vmem:[%s3] sm:$0xf]
  %v852 = vld [vmem:[%s3 + $0x4] sm:$0xf]
  %v853 = vld [vmem:[%s3 + $0x8] sm:$0xf]
  %v854 = vld [vmem:[%s3 + $0xc] sm:$0xf]
  %v855 = vld [vmem:[%s3 + $0x10] sm:$0xf]
  %v856 = vld [vmem:[%s3 + $0x14] sm:$0xf]
  %v857 = vld [vmem:[%s3 + $0x18] sm:$0xf]
  %v858 = vld [vmem:[%s3 + $0x1c] sm:$0xf]
  %v859 = vld [vmem:[%s3 + $0x20] sm:$0xf]
  %v860 = vld [vmem:[%s3 + $0x24] sm:$0xf]
  %v861 = vld [vmem:[%s3 + $0x28] sm:$0xf]
  %v862 = vld [vmem:[%s3 + $0x2c] sm:$0xf]
  %v863 = vld [vmem:[%s3 + $0x30] sm:$0xf]
  %v864 = vld [vmem:[%s3 + $0x34] sm:$0xf]
  %v865 = vld [vmem:[%s3 + $0x38] sm:$0xf]
  %v866 = vld [vmem:[%s3 + $0x3c] sm:$0xf]
  %v867 = vld [vmem:[%s4] sm:$0x1]
  %v869 = vperm.slane %v867, 0
  %v887 = vunpack.c.l.b16 %v851
  %v888 = vunpack.c.l.b16 %v852
  %v889 = vunpack.c.l.b16 %v853
  %v890 = vunpack.c.l.b16 %v854
  %v891 = vunpack.c.l.b16 %v855
  %v892 = vunpack.c.l.b16 %v856
  %v893 = vunpack.c.l.b16 %v857
  %v894 = vunpack.c.l.b16 %v858
  %v895 = vunpack.c.l.b16 %v859
  %v896 = vunpack.c.l.b16 %v860
  %v897 = vunpack.c.l.b16 %v861
  %v898 = vunpack.c.l.b16 %v862
  %v899 = vunpack.c.l.b16 %v863
  %v900 = vunpack.c.l.b16 %v864
  %v901 = vunpack.c.l.b16 %v865
  %v902 = vunpack.c.l.b16 %v866
  %v903 = vpack.c.b16 %v888, %v887
  %v904 = vpack.c.b16 %v890, %v889
  %v905 = vpack.c.b16 %v892, %v891
  %v906 = vpack.c.b16 %v894, %v893
  %v907 = vpack.c.b16 %v896, %v895
  %v908 = vpack.c.b16 %v898, %v897
  %v909 = vpack.c.b16 %v900, %v899
  %v910 = vpack.c.b16 %v902, %v901
  %919 = vmatpush.bf16.msra.mxu0 %v910
  %920 = vmatpush.bf16.msra.mxu0 %v909
  %921 = vmatpush.bf16.msra.mxu0 %v908
  %922 = vmatpush.bf16.msra.mxu0 %v907
  %923 = vmatpush.bf16.msra.mxu0 %v906
  %924 = vmatpush.bf16.msra.mxu0 %v905
  %925 = vmatpush.bf16.msra.mxu0 %v904
  %926 = vmatpush.bf16.msra.mxu0 %v903
  %927 = vmatmul.bf16.gmra.mxu0 %v843
  %v928 = vpop.f32.mrf.mxu0
  %v929 = vadd.f32 %v869, %v928
  %v930 = vpop.f32.mrf.mxu0
  %v931 = vadd.f32 %v869, %v930
  %932 = vmatmul.bf16.gmra.mxu0 %v844
  %v933 = vpop.f32.mrf.mxu0
  %v934 = vadd.f32 %v869, %v933
  %v935 = vpop.f32.mrf.mxu0
  %v936 = vadd.f32 %v869, %v935
  %937 = vmatmul.bf16.gmra.mxu0 %v845
  %v938 = vpop.f32.mrf.mxu0
  %v939 = vadd.f32 %v869, %v938
  %v940 = vpop.f32.mrf.mxu0
  %v941 = vadd.f32 %v869, %v940
  %942 = vmatmul.bf16.gmra.mxu0 %v846
  %v943 = vpop.f32.mrf.mxu0
  %v944 = vadd.f32 %v869, %v943
  %v945 = vpop.f32.mrf.mxu0
  %v946 = vadd.f32 %v869, %v945
  %947 = vmatmul.bf16.gmra.mxu0 %v847
  %v948 = vpop.f32.mrf.mxu0
  %v949 = vadd.f32 %v869, %v948
  %v950 = vpop.f32.mrf.mxu0
  %v951 = vadd.f32 %v869, %v950
  %952 = vmatmul.bf16.gmra.mxu0 %v848
  %v953 = vpop.f32.mrf.mxu0
  %v954 = vadd.f32 %v869, %v953
  %v955 = vpop.f32.mrf.mxu0
  %v956 = vadd.f32 %v869, %v955
  %957 = vmatmul.bf16.gmra.mxu0 %v849
  %v958 = vpop.f32.mrf.mxu0
  %v959 = vadd.f32 %v869, %v958
  %v960 = vpop.f32.mrf.mxu0
  %v961 = vadd.f32 %v869, %v960
  %962 = vmatmul.bf16.gmra.mxu0 %v850
  %v963 = vpop.f32.mrf.mxu0
  %v964 = vadd.f32 %v869, %v963
  %v965 = vpop.f32.mrf.mxu0
  %v966 = vadd.f32 %v869, %v965
  %967 = vdwg.mxu0
  %968 = vst.msk [vmem:[%s5] sm:$0xff] %vm65, %v929
  %969 = vst.msk [vmem:[%s5 + $0x8] sm:$0xff] %vm65, %v931
  %970 = vst.msk [vmem:[%s5 + $0x10] sm:$0xff] %vm65, %v934
  %971 = vst.msk [vmem:[%s5 + $0x18] sm:$0xff] %vm65, %v936
  %972 = vst.msk [vmem:[%s5 + $0x20] sm:$0xff] %vm65, %v939
  %973 = vst.msk [vmem:[%s5 + $0x28] sm:$0xff] %vm65, %v941
  %974 = vst.msk [vmem:[%s5 + $0x30] sm:$0xff] %vm65, %v944
  %975 = vst.msk [vmem:[%s5 + $0x38] sm:$0xff] %vm65, %v946
  %976 = vst.msk [vmem:[%s5 + $0x40] sm:$0xff] %vm65, %v949
  %977 = vst.msk [vmem:[%s5 + $0x48] sm:$0xff] %vm65, %v951
  %978 = vst.msk [vmem:[%s5 + $0x50] sm:$0xff] %vm65, %v954
  %979 = vst.msk [vmem:[%s5 + $0x58] sm:$0xff] %vm65, %v956
  %980 = vst.msk [vmem:[%s5 + $0x60] sm:$0xff] %vm65, %v959
  %981 = vst.msk [vmem:[%s5 + $0x68] sm:$0xff] %vm65, %v961
  %982 = vst.msk [vmem:[%s5 + $0x70] sm:$0xff] %vm65, %v964
  %983 = vst.msk [vmem:[%s5 + $0x78] sm:$0xff] %vm65, %v966
  // Predicated region
  $region22: #{mlp_forward.1} parent=0 // pred_check
    _
  $region23: #{mlp_forward.1} parent=0 // pred_check_branch
    %985 = sbr.rel (0) target = $region25
  $region24: #{mlp_forward.1} parent=0 // pred_region
    _
  $region25: #{mlp_forward.1} parent=0 // pred_fallthru
    _
  // Predicated region
  $region26: #{mlp_forward.1} parent=0 // pred_check
    _
  $region27: #{mlp_forward.1} parent=0 // pred_check_branch
    %987 = sbr.rel (0) target = $region29
  $region28: #{mlp_forward.1} parent=0 // pred_region
    _
  $region29: #{mlp_forward.1} parent=0 // pred_fallthru
    _

</llo_original>
